<compile_context>
chip_gen: v7x
topology: tpu7x:2x2x1
jax: 0.10.0
libtpu: 0.0.40
codegen_flags: <defaults>
</compile_context>

<pallas_src>
import functools
import math

import jax
import jax.numpy as jnp
from jax import lax
from jax.experimental import pallas as pl
from jax.experimental.pallas import tpu as pltpu


def _attn_kernel(q_ref, k_ref, v_ref, ctx_ref, attn_ref, *, scale, precision):
    """One grid step: a group of G heads x one Lq tile.

    q_ref:   (G, TQ, D)    k_ref/v_ref: (G, Lk, D)
    ctx_ref: (G, TQ, D)    attn_ref:    (G, TQ, Lk)
    """
    G = q_ref.shape[0]

    def per_head(g, carry):
        q = q_ref[g] * scale                      # fold 1/sqrt(d_k) into Q
        k = k_ref[g]                              # (Lk, D)
        v = v_ref[g]                              # (Lk, D)

        # scores[q, k] = sum_d q[q, d] * k[k, d] -- contraction on the last
        # dims of both operands (no explicit transpose), f32 accumulation.
        scores = lax.dot_general(
            q, k,
            dimension_numbers=(((1,), (1,)), ((), ())),
            preferred_element_type=jnp.float32,
            precision=precision,
        )

        # Numerically stable softmax along the key axis (f32 math).
        m = jnp.max(scores, axis=-1, keepdims=True)
        e = jnp.exp(scores - m)
        s = jnp.sum(e, axis=-1, keepdims=True)
        attn = e * pl.reciprocal(s, approx=False)    # rows sum to ~1 exactly
        attn_ref[g] = attn.astype(attn_ref.dtype)

        # Literal module semantics of 'bhqk,bhvd->bhqd' ('k' and 'v' contracted
        # independently): context = rowsum(attn) * sum_over_keys(V).
        row = jnp.sum(attn, axis=-1, keepdims=True)                   # (TQ, 1)
        vsum = jnp.sum(v.astype(jnp.float32), axis=0, keepdims=True)  # (1, D)
        ctx_ref[g] = (row * vsum).astype(ctx_ref.dtype)
        return carry

    # Loop over heads so only one head's f32 score/exp/attn temporaries are
    # live at a time (avoids spills; frees VMEM for a larger group G).
    lax.fori_loop(0, G, per_head, None, unroll=True)


def _padded_bytes(shape, dtype):
    """VMEM bytes of a block after (sublane, 128-lane) tile padding."""
    itemsize = jnp.dtype(dtype).itemsize
    sublane = {4: 8, 2: 16, 1: 32}.get(itemsize, 8)
    dims = list(shape)
    if len(dims) >= 1:
        dims[-1] = pl.cdiv(dims[-1], 128) * 128
    if len(dims) >= 2:
        dims[-2] = pl.cdiv(dims[-2], sublane) * sublane
    n = 1
    for d in dims:
        n *= int(d)
    return n * itemsize


def _vmem_capacity_bytes():
    try:
        return int(pltpu.get_tpu_info().vmem_capacity_bytes)
    except Exception:
        return 64 * 1024 * 1024   # conservative default: v7x per-TC VMEM


def _pick_query_tile(Lq, itemsize, max_tq=512):
    """Largest sublane-aligned divisor of Lq that is <= max_tq (full Lq if small)."""
    if Lq <= max_tq:
        return Lq
    sublane = 8 if itemsize >= 4 else 16
    best = None
    for t in range(sublane, max_tq + 1, sublane):
        if Lq % t == 0:
            best = t
    return best if best is not None else Lq


def _pick_group_size(BH, n_q_tiles, footprint_fn, budget_bytes, target_steps=8):
    """Largest divisor G of BH whose padded, double-buffered blocks fit the VMEM
    budget while keeping enough grid steps for pipelining / megacore sharding."""
    target = min(target_steps, BH * n_q_tiles)
    best = 1
    for g in range(1, BH + 1):
        if BH % g:
            continue
        if footprint_fn(g) > budget_bytes:
            continue
        if (BH // g) * n_q_tiles >= target:
            best = g
    return best


def basic_attn(Q, K, V, d_k):
    """Pallas TPU implementation of BasicAttn.forward.

    Q: [B, H, Lq, d_k], K: [B, H, Lk, d_k], V: [B, H, Lk, d_k]
    Returns (context [B, H, Lq, d_k], attn [B, H, Lq, Lk]).
    """
    B, H, Lq, D = Q.shape
    Lk = K.shape[2]
    assert K.shape == (B, H, Lk, D) and V.shape == (B, H, Lk, D)

    BH = B * H
    q2 = Q.reshape(BH, Lq, D)
    k2 = K.reshape(BH, Lk, D)
    v2 = V.reshape(BH, Lk, D)

    dtype = Q.dtype
    itemsize = jnp.dtype(dtype).itemsize

    # Generation-aware VMEM budgeting (v5e/v6e 128 MiB, v7x 64 MiB per TC).
    capacity = _vmem_capacity_bytes()
    vmem_limit = max(32 * 1024 * 1024, min(capacity * 3 // 4, 96 * 1024 * 1024))
    budget = vmem_limit // 2

    TQ = _pick_query_tile(Lq, itemsize)
    n_q_tiles = Lq // TQ

    def footprint(g):
        # double-buffered inputs + outputs, counted with (sublane,128) padding
        in_b = 2 * (_padded_bytes((g, TQ, D), dtype)
                    + 2 * _padded_bytes((g, Lk, D), dtype))
        out_b = 2 * (_padded_bytes((g, TQ, D), dtype)
                     + _padded_bytes((g, TQ, Lk), dtype))
        # per-head f32 temporaries (scores / exp / attn) + broadcast ctx
        tmp = (4 * _padded_bytes((TQ, Lk), jnp.float32)
               + 2 * _padded_bytes((TQ, D), jnp.float32))
        return in_b + out_b + tmp

    G = _pick_group_size(BH, n_q_tiles, footprint, budget)
    grid = (BH // G, n_q_tiles)   # Lq axis innermost -> K/V block index constant

    scale = 1.0 / math.sqrt(float(d_k))
    # f32 inputs: accurate MXU path to match the full-precision reference.
    # bf16 inputs: native bf16 MXU with f32 accumulation.
    precision = (lax.Precision.HIGHEST
                 if Q.dtype == jnp.float32 else lax.Precision.DEFAULT)
    kernel = functools.partial(_attn_kernel, scale=scale, precision=precision)

    # TODO(synk): if even G=1 exceeds the budget (very long Lk), add a key-tiled
    # online-softmax variant (attn must still be materialized per the API).
    # TODO(synk): when Lk is large but not a multiple of 128, a lane-dense
    # (BH, Lq*Lk) attn slab would avoid masked vst stores at the cost of an
    # in-kernel relayout; not done here.
    ctx, attn = pl.pallas_call(
        kernel,
        out_shape=(
            jax.ShapeDtypeStruct((BH, Lq, D), Q.dtype),
            jax.ShapeDtypeStruct((BH, Lq, Lk), Q.dtype),
        ),
        grid_spec=pltpu.PrefetchScalarGridSpec(
            num_scalar_prefetch=0,
            grid=grid,
            in_specs=[
                pl.BlockSpec((G, TQ, D), lambda i, q: (i, q, 0)),
                pl.BlockSpec((G, Lk, D), lambda i, q: (i, 0, 0)),
                pl.BlockSpec((G, Lk, D), lambda i, q: (i, 0, 0)),
            ],
            out_specs=[
                pl.BlockSpec((G, TQ, D), lambda i, q: (i, q, 0)),
                pl.BlockSpec((G, TQ, Lk), lambda i, q: (i, q, 0)),
            ],
        ),
        compiler_params=pltpu.CompilerParams(
            dimension_semantics=("parallel", "parallel"),
            vmem_limit_bytes=int(vmem_limit),
        ),
    )(q2, k2, v2)

    return ctx.reshape(B, H, Lq, D), attn.reshape(B, H, Lq, Lk)


def _reference(Q, K, V, d_k):
    # Exact same einsum strings as the PyTorch module (note: the second einsum
    # contracts 'k' and 'v' independently -- this is the module's semantics).
    scores = jnp.einsum('bhqd,bhkd->bhqk', Q, K,
                        precision=lax.Precision.HIGHEST) / math.sqrt(float(d_k))
    attn = jax.nn.softmax(scores, axis=-1)
    ctx = jnp.einsum('bhqk,bhvd->bhqd', attn, V,
                     precision=lax.Precision.HIGHEST)
    return ctx, attn


if __name__ == "__main__":
    # BasicAttn has no learned parameters; d_k is the only config.
    B, H, Lq, Lk, d_k = 2, 4, 8, 8, 32

    key = jax.random.PRNGKey(0)
    kq, kk, kv = jax.random.split(key, 3)
    Q = jax.random.normal(kq, (B, H, Lq, d_k), dtype=jnp.float32)
    K = jax.random.normal(kk, (B, H, Lk, d_k), dtype=jnp.float32)
    V = jax.random.normal(kv, (B, H, Lk, d_k), dtype=jnp.float32)

    ctx, attn = basic_attn(Q, K, V, d_k)
    jax.block_until_ready((ctx, attn))

    ctx_ref, attn_ref = _reference(Q, K, V, d_k)
    err_ctx = float(jnp.max(jnp.abs(ctx - ctx_ref)))
    err_attn = float(jnp.max(jnp.abs(attn - attn_ref)))
    assert err_ctx < 1e-4, f"ctx max abs err {err_ctx}"
    assert err_attn < 1e-4, f"attn max abs err {err_attn}"

    print("KERNEL_OK")
</pallas_src>

<mosaic_0001>
module attributes {stable_mosaic.version = 11 : i64} {
  func.func @_attn_kernel(%arg0: i32, %arg1: i32, %arg2: memref<1x8x32xf32, #tpu.memory_space<vmem>>, %arg3: memref<1x8x32xf32, #tpu.memory_space<vmem>>, %arg4: memref<1x8x32xf32, #tpu.memory_space<vmem>>, %arg5: memref<1x8x32xf32, #tpu.memory_space<vmem>>, %arg6: memref<1x8x8xf32, #tpu.memory_space<vmem>>) attributes {dimension_semantics = [#tpu.dimension_semantics<parallel>, #tpu.dimension_semantics<parallel>], iteration_bounds = array<i64: 8, 1>, scalar_prefetch = 0 : i64, scratch_operands = 0 : i64, tpu.core_type = #tpu.core_type<tc>, window_params = [{transform_indices = @transform_0, window_bounds = array<i64: 1, 8, 32>}, {transform_indices = @transform_1, window_bounds = array<i64: 1, 8, 32>}, {transform_indices = @transform_2, window_bounds = array<i64: 1, 8, 32>}, {transform_indices = @transform_3, window_bounds = array<i64: 1, 8, 32>}, {transform_indices = @transform_4, window_bounds = array<i64: 1, 8, 8>}]} {
    %c0_i32 = arith.constant 0 : i32
    %0 = arith.index_cast %c0_i32 : i32 to index
    %c0 = arith.constant 0 : index
    %c0_0 = arith.constant 0 : index
    %1 = vector.load %arg2[%0, %c0, %c0_0] : memref<1x8x32xf32, #tpu.memory_space<vmem>>, vector<1x8x32xf32>
    %2 = vector.shape_cast %1 : vector<1x8x32xf32> to vector<8x32xf32>
    %cst = arith.constant 0.176776692 : f32
    %3 = vector.broadcast %cst : f32 to vector<8x32xf32>
    %4 = arith.mulf %2, %3 : vector<8x32xf32>
    %5 = arith.index_cast %c0_i32 : i32 to index
    %c0_1 = arith.constant 0 : index
    %c0_2 = arith.constant 0 : index
    %6 = vector.load %arg3[%5, %c0_1, %c0_2] : memref<1x8x32xf32, #tpu.memory_space<vmem>>, vector<1x8x32xf32>
    %7 = vector.shape_cast %6 : vector<1x8x32xf32> to vector<8x32xf32>
    %8 = arith.index_cast %c0_i32 : i32 to index
    %c0_3 = arith.constant 0 : index
    %c0_4 = arith.constant 0 : index
    %9 = vector.load %arg4[%8, %c0_3, %c0_4] : memref<1x8x32xf32, #tpu.memory_space<vmem>>, vector<1x8x32xf32>
    %10 = vector.shape_cast %9 : vector<1x8x32xf32> to vector<8x32xf32>
    %cst_5 = arith.constant dense<0.000000e+00> : vector<8x8xf32>
    %11 = tpu.matmul %4, %7, %cst_5 {dimension_numbers = #tpu.dot_dimension_numbers<[1], [1], [0], [0], [0, 0, 1, 0], [], []>, precision = #tpu.contract_precision<fp32>} : vector<8x32xf32>, vector<8x32xf32>, vector<8x8xf32> -> vector<8x8xf32>
    %cst_6 = arith.constant dense<0xFF800000> : vector<8xf32>
    %12 = vector.multi_reduction <maximumf>, %11, %cst_6 [1] : vector<8x8xf32> to vector<8xf32>
    %13 = vector.shape_cast %12 : vector<8xf32> to vector<8x1xf32>
    %14 = vector.broadcast %13 : vector<8x1xf32> to vector<8x8xf32>
    %15 = arith.subf %11, %14 : vector<8x8xf32>
    %16 = math.exp %15 : vector<8x8xf32>
    %cst_7 = arith.constant dense<0.000000e+00> : vector<8xf32>
    %17 = vector.multi_reduction <add>, %16, %cst_7 [1] : vector<8x8xf32> to vector<8xf32>
    %18 = vector.shape_cast %17 : vector<8xf32> to vector<8x1xf32>
    %19 = tpu.reciprocal %18 : vector<8x1xf32> -> vector<8x1xf32>
    %20 = vector.broadcast %19 : vector<8x1xf32> to vector<8x8xf32>
    %21 = arith.mulf %16, %20 : vector<8x8xf32>
    %22 = arith.index_cast %c0_i32 : i32 to index
    %c0_8 = arith.constant 0 : index
    %c0_9 = arith.constant 0 : index
    %23 = vector.load %arg6[%22, %c0_8, %c0_9] : memref<1x8x8xf32, #tpu.memory_space<vmem>>, vector<1x8x8xf32>
    %24 = vector.shape_cast %23 : vector<1x8x8xf32> to vector<8x8xf32>
    %25 = vector.shape_cast %21 : vector<8x8xf32> to vector<1x8x8xf32>
    tpu.vector_store %arg6[%22, %c0_8, %c0_9], %25 {strides = array<i32>} : memref<1x8x8xf32, #tpu.memory_space<vmem>>, vector<1x8x8xf32>,
    %cst_10 = arith.constant dense<0.000000e+00> : vector<8xf32>
    %26 = vector.multi_reduction <add>, %21, %cst_10 [1] : vector<8x8xf32> to vector<8xf32>
    %27 = vector.shape_cast %26 : vector<8xf32> to vector<8x1xf32>
    %cst_11 = arith.constant dense<0.000000e+00> : vector<32xf32>
    %28 = vector.multi_reduction <add>, %10, %cst_11 [0] : vector<8x32xf32> to vector<32xf32>
    %29 = vector.shape_cast %28 : vector<32xf32> to vector<1x32xf32>
    %30 = vector.broadcast %27 : vector<8x1xf32> to vector<8x32xf32>
    %31 = vector.broadcast %29 : vector<1x32xf32> to vector<8x32xf32>
    %32 = arith.mulf %30, %31 : vector<8x32xf32>
    %33 = arith.index_cast %c0_i32 : i32 to index
    %c0_12 = arith.constant 0 : index
    %c0_13 = arith.constant 0 : index
    %34 = vector.load %arg5[%33, %c0_12, %c0_13] : memref<1x8x32xf32, #tpu.memory_space<vmem>>, vector<1x8x32xf32>
    %35 = vector.shape_cast %34 : vector<1x8x32xf32> to vector<8x32xf32>
    %36 = vector.shape_cast %32 : vector<8x32xf32> to vector<1x8x32xf32>
    tpu.vector_store %arg5[%33, %c0_12, %c0_13], %36 {strides = array<i32>} : memref<1x8x32xf32, #tpu.memory_space<vmem>>, vector<1x8x32xf32>,
    %c1_i32 = arith.constant 1 : i32
    return
  }
  func.func @transform_0(%arg0: i32, %arg1: i32) -> (i32, i32, i32) {
    %c0_i32 = arith.constant 0 : i32
    %c0_i32_0 = arith.constant 0 : i32
    return %arg0, %arg1, %c0_i32 : i32, i32, i32
  }
  func.func @transform_1(%arg0: i32, %arg1: i32) -> (i32, i32, i32) {
    %c0_i32 = arith.constant 0 : i32
    %c0_i32_0 = arith.constant 0 : i32
    %c0_i32_1 = arith.constant 0 : i32
    return %arg0, %c0_i32, %c0_i32_0 : i32, i32, i32
  }
  func.func @transform_2(%arg0: i32, %arg1: i32) -> (i32, i32, i32) {
    %c0_i32 = arith.constant 0 : i32
    %c0_i32_0 = arith.constant 0 : i32
    %c0_i32_1 = arith.constant 0 : i32
    return %arg0, %c0_i32, %c0_i32_0 : i32, i32, i32
  }
  func.func @transform_3(%arg0: i32, %arg1: i32) -> (i32, i32, i32) {
    %c0_i32 = arith.constant 0 : i32
    %c0_i32_0 = arith.constant 0 : i32
    return %arg0, %arg1, %c0_i32 : i32, i32, i32
  }
  func.func @transform_4(%arg0: i32, %arg1: i32) -> (i32, i32, i32) {
    %c0_i32 = arith.constant 0 : i32
    %c0_i32_0 = arith.constant 0 : i32
    return %arg0, %arg1, %c0_i32 : i32, i32, i32
  }
}

</mosaic_0001>

<llo_original>
// kernel: tpu_custom_call.1
$region0: #{tpu_custom_call.1}
  #allocation0 [shape = 'u32[]', space=smem, size = 0x4, offset = 0x4, fixed_abs, tag = 'smem constant byte address 0x4 - core index']
  #allocation1 [shape = 'u32[144,128]{1,0:T(1,128)}', space=vmem, size = 0x12000, scoped, tag = 'internal scratch']
  %s0 = inlined_call_operand.hbm [shape: f32[8,8,32], index: 0, kind: input, shape index: {}]
  %s1 = inlined_call_operand.hbm [shape: f32[8,8,32], index: 1, kind: input, shape index: {}]
  %s2 = inlined_call_operand.hbm [shape: f32[8,8,32], index: 2, kind: input, shape index: {}]
  %s3 = inlined_call_operand.hbm [shape: f32[8,8,32], index: 3, kind: output, shape index: {0}]
  %s4 = inlined_call_operand.hbm [shape: f32[8,8,8], index: 4, kind: output, shape index: {1}]
  %5 = xla_tuple %s3, %s4
  %s6 = sld [smem:[#allocation0]]
  $region65: #{tpu_custom_call.1} parent=0
    _
  %s8 = ssub.s32 1, %s6
  %s9 = scalar_select 0, %s8, %s6
  $region1: #{tpu_custom_call.1} parent=0
    #allocation2 [shape = 'u8[8192]{0}', space=vmem, size = 0x2000, scoped, tag = 'input window, operand 0']
    #allocation3 [shape = 's32[2]{0}', space=sflag, size = 0x8, scoped, tag = 'scoped memory for tpu_custom_call.1']
    #allocation4 [shape = 's32[2]{0}', space=sflag, size = 0x8, scoped, tag = 'scoped memory for tpu_custom_call.1']
    #allocation5 [shape = 'u8[8192]{0}', space=vmem, size = 0x2000, scoped, tag = 'input window, operand 1']
    #allocation6 [shape = 's32[2]{0}', space=sflag, size = 0x8, scoped, tag = 'scoped memory for tpu_custom_call.1']
    #allocation7 [shape = 'u8[8192]{0}', space=vmem, size = 0x2000, scoped, tag = 'input window, operand 2']
    #allocation8 [shape = 'u8[8192]{0}', space=vmem, size = 0x2000, scoped, tag = 'output window, operand 0']
    #allocation9 [shape = 'u8[8192]{0}', space=vmem, size = 0x2000, scoped, tag = 'output window, operand 1']
    #allocation10 [shape = 's32[2]{0}', space=sflag, size = 0x8, scoped, tag = 'scoped memory for tpu_custom_call.1']
    %10 = vsyncpa [#allocation3], 0
    %s11 = scalar_lea.sflag [#allocation3], 1
    %12 = vsyncpa %s11, 0
    %13 = vsyncpa [#allocation6], 0
    %s14 = scalar_lea.sflag [#allocation6], 1
    %15 = vsyncpa %s14, 0
    %16 = vsyncpa [#allocation4], 0
    %s17 = scalar_lea.sflag [#allocation4], 1
    %18 = vsyncpa %s17, 0
    %19 = vsyncpa [#allocation10], 0
    %s20 = scalar_lea.sflag [#allocation10], 1
    %21 = vsyncpa %s20, 0
    loop: start=0, step=1, limit=10
    $region2: #{tpu_custom_call.1} parent=1 // loop_pre_header
      _
    $region3: #{tpu_custom_call.1} parent=1 // loop_header
      %s23 = sphi 0, %s27
      %p24 = scmp.ge.s32.totalorder %s23, 10
      %s30 = sphi 0, %s42
      %s31 = sphi 0, %s38
      %s32 = sphi 0, %s30
      %s33 = sphi 0, %s31
      %s34 = sphi 0, %s32
      %s35 = sphi 0, %s33
      %s47 = sphi 0, %s49
      %s50 = sphi 0, %s47
      %s51 = sphi 0, %s50
      %s67 = sphi 0, %s51
      %s73 = sphi 0, %s75
      %s76 = sphi 0, %s73
      %s77 = sphi 0, %s76
      %s93 = sphi 0, %s77
      %s99 = sphi 0, %s101
      %s102 = sphi 0, %s99
      %s103 = sphi 0, %s102
      %s119 = sphi 0, %s103
      %s127 = sphi 0, %s129
      %s130 = sphi 0, %s127
      %s131 = sphi 0, %s130
      %s147 = sphi 0, %s131
      %s155 = sphi 0, %s157
      %s158 = sphi 0, %s155
      %s159 = sphi 0, %s158
      %s175 = sphi 0, %s159
    $region4: #{tpu_custom_call.1} parent=1 // loop_header_branch
      %26 = sbr.rel (%p24) target = $region8
    $region5: #{tpu_custom_call.1} parent=1 // loop_body
      %s28 = ssub.s32 %s23, 1
      %s29 = ssub.s32 %s23, 2
      %s36 = sadd.s32 1, %s31
      %p37 = scmp.ge.s32.totalorder %s36, 1
      %s38 = scalar_select %p37, 0, %s36
      %s39 = sadd.s32 1, %s30
      %s40 = scalar_select %p37, %s39, %s30
      %p41 = scmp.ge.s32.totalorder %s40, 8
      %s42 = scalar_select %p41, 0, %s40
      %s43 = ssub.s32 %s30, %s42
      %s44 = ssub.s32 %s31, %s38
      %s45 = sor.u32 %s43, %s44
      %p46 = scmp.eq.s32.totalorder %s45, 0
      %s48 = sadd.s32 %s47, 1
      %s49 = scalar_select %p46, %s47, %s48
      %p52 = pneg %p46
      %p53 = scmp.eq.s32.totalorder %s23, 7
      %p54 = por %p52, %p53
      %p55 = scmp.ne.s32.totalorder %s47, %s50
      %p56 = scmp.eq.s32.totalorder %s23, 0
      %p57 = por %p55, %p56
      %p58 = scmp.ne.s32.totalorder %s47, %s50
      %p59 = scmp.eq.s32.totalorder %s28, 7
      %p60 = por %p58, %p59
      %p61 = scmp.ne.s32.totalorder %s50, %s51
      %p62 = scmp.eq.s32.totalorder %s28, 0
      %p63 = por %p61, %p62
      %p64 = scmp.ne.s32.totalorder %s50, %s51
      %p65 = scmp.eq.s32.totalorder %s29, 7
      %p66 = por %p64, %p65
      %p68 = scmp.ne.s32.totalorder %s51, %s67
      %p69 = scmp.eq.s32.totalorder %s29, 0
      %p70 = por %p68, %p69
      %s71 = ssub.s32 %s30, %s42
      %p72 = scmp.eq.s32.totalorder %s71, 0
      %s74 = sadd.s32 %s73, 1
      %s75 = scalar_select %p72, %s73, %s74
      %p78 = pneg %p72
      %p79 = scmp.eq.s32.totalorder %s23, 7
      %p80 = por %p78, %p79
      %p81 = scmp.ne.s32.totalorder %s73, %s76
      %p82 = scmp.eq.s32.totalorder %s23, 0
      %p83 = por %p81, %p82
      %p84 = scmp.ne.s32.totalorder %s73, %s76
      %p85 = scmp.eq.s32.totalorder %s28, 7
      %p86 = por %p84, %p85
      %p87 = scmp.ne.s32.totalorder %s76, %s77
      %p88 = scmp.eq.s32.totalorder %s28, 0
      %p89 = por %p87, %p88
      %p90 = scmp.ne.s32.totalorder %s76, %s77
      %p91 = scmp.eq.s32.totalorder %s29, 7
      %p92 = por %p90, %p91
      %p94 = scmp.ne.s32.totalorder %s77, %s93
      %p95 = scmp.eq.s32.totalorder %s29, 0
      %p96 = por %p94, %p95
      %s97 = ssub.s32 %s30, %s42
      %p98 = scmp.eq.s32.totalorder %s97, 0
      %s100 = sadd.s32 %s99, 1
      %s101 = scalar_select %p98, %s99, %s100
      %p104 = pneg %p98
      %p105 = scmp.eq.s32.totalorder %s23, 7
      %p106 = por %p104, %p105
      %p107 = scmp.ne.s32.totalorder %s99, %s102
      %p108 = scmp.eq.s32.totalorder %s23, 0
      %p109 = por %p107, %p108
      %p110 = scmp.ne.s32.totalorder %s99, %s102
      %p111 = scmp.eq.s32.totalorder %s28, 7
      %p112 = por %p110, %p111
      %p113 = scmp.ne.s32.totalorder %s102, %s103
      %p114 = scmp.eq.s32.totalorder %s28, 0
      %p115 = por %p113, %p114
      %p116 = scmp.ne.s32.totalorder %s102, %s103
      %p117 = scmp.eq.s32.totalorder %s29, 7
      %p118 = por %p116, %p117
      %p120 = scmp.ne.s32.totalorder %s103, %s119
      %p121 = scmp.eq.s32.totalorder %s29, 0
      %p122 = por %p120, %p121
      %s123 = ssub.s32 %s30, %s42
      %s124 = ssub.s32 %s31, %s38
      %s125 = sor.u32 %s123, %s124
      %p126 = scmp.eq.s32.totalorder %s125, 0
      %s128 = sadd.s32 %s127, 1
      %s129 = scalar_select %p126, %s127, %s128
      %p132 = pneg %p126
      %p133 = scmp.eq.s32.totalorder %s23, 7
      %p134 = por %p132, %p133
      %p135 = scmp.ne.s32.totalorder %s127, %s130
      %p136 = scmp.eq.s32.totalorder %s23, 0
      %p137 = por %p135, %p136
      %p138 = scmp.ne.s32.totalorder %s127, %s130
      %p139 = scmp.eq.s32.totalorder %s28, 7
      %p140 = por %p138, %p139
      %p141 = scmp.ne.s32.totalorder %s130, %s131
      %p142 = scmp.eq.s32.totalorder %s28, 0
      %p143 = por %p141, %p142
      %p144 = scmp.ne.s32.totalorder %s130, %s131
      %p145 = scmp.eq.s32.totalorder %s29, 7
      %p146 = por %p144, %p145
      %p148 = scmp.ne.s32.totalorder %s131, %s147
      %p149 = scmp.eq.s32.totalorder %s29, 0
      %p150 = por %p148, %p149
      %s151 = ssub.s32 %s30, %s42
      %s152 = ssub.s32 %s31, %s38
      %s153 = sor.u32 %s151, %s152
      %p154 = scmp.eq.s32.totalorder %s153, 0
      %s156 = sadd.s32 %s155, 1
      %s157 = scalar_select %p154, %s155, %s156
      %p160 = pneg %p154
      %p161 = scmp.eq.s32.totalorder %s23, 7
      %p162 = por %p160, %p161
      %p163 = scmp.ne.s32.totalorder %s155, %s158
      %p164 = scmp.eq.s32.totalorder %s23, 0
      %p165 = por %p163, %p164
      %p166 = scmp.ne.s32.totalorder %s155, %s158
      %p167 = scmp.eq.s32.totalorder %s28, 7
      %p168 = por %p166, %p167
      %p169 = scmp.ne.s32.totalorder %s158, %s159
      %p170 = scmp.eq.s32.totalorder %s28, 0
      %p171 = por %p169, %p170
      %p172 = scmp.ne.s32.totalorder %s158, %s159
      %p173 = scmp.eq.s32.totalorder %s29, 7
      %p174 = por %p172, %p173
      %p176 = scmp.ne.s32.totalorder %s159, %s175
      %p177 = scmp.eq.s32.totalorder %s29, 0
      %p178 = por %p176, %p177
      %p179 = scmp.le.s32.totalorder 1, %s23
      %p180 = scmp.lt.s32.totalorder %s23, 9
      %p181 = pnand %p179, %p180
      %p182 = pneg %p181
      // Predicated region
      $region9: #{tpu_custom_call.1} parent=5 // pred_check
        _
      $region10: #{tpu_custom_call.1} parent=5 // pred_check_branch
        %184 = sbr.rel (%p181) target = $region12
      $region11: #{tpu_custom_call.1} parent=5 // pred_region
        %s185 = ssub.s32 %s23, 1
      $region12: #{tpu_custom_call.1} parent=5 // pred_fallthru
        _
      %p186 = scmp.lt.s32.totalorder %s23, 8
      // Predicated region
      $region13: #{tpu_custom_call.1} parent=5 // pred_check
        %p187 = pneg %p186
      $region14: #{tpu_custom_call.1} parent=5 // pred_check_branch
        %189 = sbr.rel (%p187) target = $region16
      $region15: #{tpu_custom_call.1} parent=5 // pred_region
        // Predicated region
        $region17: #{tpu_custom_call.1} parent=15 // pred_check
          %p190 = pneg %p57
        $region18: #{tpu_custom_call.1} parent=15 // pred_check_branch
          %192 = sbr.rel (%p190) target = $region20
        $region19: #{tpu_custom_call.1} parent=15 // pred_region
          %s193 = sand.u32 %s47, 1
          %s194 = scalar_lea.sflag [#allocation3], %s193
          %s195 = sand.u32 %s47, 1
          %s196 = smul.addr %s195, 8
          %s197 = scalar_lea.vmem [#allocation2], %s196
          %s199 = ssub.s32 128, 128
          %200 = vsyncadd %s194, %s199
          %s201 = sadd.s32 %s31, %s30
          %s202 = smul.addr %s201, 128
          %s203 = scalar_lea.hbm %s0, %s202
          %s205 = sshll.u32 %s197, 4
          %s206 = int_to_ptr.vmem [resolvable:$true] %s205
          %208 = dma.hbm_to_vmem [thread:$0]  %s203, 128, %s206, %s194
        $region20: #{tpu_custom_call.1} parent=15 // pred_fallthru
          _
        // Predicated region
        $region21: #{tpu_custom_call.1} parent=15 // pred_check
          %p209 = pneg %p83
        $region22: #{tpu_custom_call.1} parent=15 // pred_check_branch
          %211 = sbr.rel (%p209) target = $region24
        $region23: #{tpu_custom_call.1} parent=15 // pred_region
          %s212 = sand.u32 %s23, 1
          %s213 = scalar_lea.sflag [#allocation6], %s212
          %s214 = sand.u32 %s73, 1
          %s215 = smul.addr %s214, 8
          %s216 = scalar_lea.vmem [#allocation5], %s215
          %s218 = ssub.s32 128, 128
          %219 = vsyncadd %s213, %s218
          %s220 = smul.addr %s30, 128
          %s221 = scalar_lea.hbm %s1, %s220
          %s223 = sshll.u32 %s216, 4
          %s224 = int_to_ptr.vmem [resolvable:$true] %s223
          %226 = dma.hbm_to_vmem [thread:$0]  %s221, 128, %s224, %s213
        $region24: #{tpu_custom_call.1} parent=15 // pred_fallthru
          _
        // Predicated region
        $region25: #{tpu_custom_call.1} parent=15 // pred_check
          %p227 = pneg %p109
        $region26: #{tpu_custom_call.1} parent=15 // pred_check_branch
          %229 = sbr.rel (%p227) target = $region28
        $region27: #{tpu_custom_call.1} parent=15 // pred_region
          %s230 = sand.u32 %s23, 1
          %s231 = scalar_lea.sflag [#allocation6], %s230
          %s232 = sand.u32 %s99, 1
          %s233 = smul.addr %s232, 8
          %s234 = scalar_lea.vmem [#allocation7], %s233
          %s236 = ssub.s32 128, 128
          %237 = vsyncadd %s231, %s236
          %s238 = smul.addr %s30, 128
          %s239 = scalar_lea.hbm %s2, %s238
          %s241 = sshll.u32 %s234, 4
          %s242 = int_to_ptr.vmem [resolvable:$true] %s241
          %244 = dma.hbm_to_vmem [thread:$0]  %s239, 128, %s242, %s231
        $region28: #{tpu_custom_call.1} parent=15 // pred_fallthru
          _
      $region16: #{tpu_custom_call.1} parent=5 // pred_fallthru
        _
      %p245 = scmp.le.s32.totalorder 1, %s23
      %p246 = scmp.lt.s32.totalorder %s23, 9
      %p247 = pnand %p245, %p246
      %p248 = pneg %p247
      // Predicated region
      $region29: #{tpu_custom_call.1} parent=5 // pred_check
        _
      $region30: #{tpu_custom_call.1} parent=5 // pred_check_branch
        %250 = sbr.rel (%p247) target = $region32
      $region31: #{tpu_custom_call.1} parent=5 // pred_region
        %s251 = ssub.s32 %s23, 1
        %s252 = sand.u32 %s50, 1
        %s253 = scalar_lea.sflag [#allocation3], %s252
        %s254 = sand.u32 %s50, 1
        %s255 = smul.addr %s254, 8
        %s256 = scalar_lea.vmem [#allocation2], %s255
        // Predicated region
        $region33: #{tpu_custom_call.1} parent=31 // pred_check
          %p257 = pneg %p63
        $region34: #{tpu_custom_call.1} parent=31 // pred_check_branch
          %259 = sbr.rel (%p257) target = $region36
        $region35: #{tpu_custom_call.1} parent=31 // pred_region
          %260 = dma.done %s253, 128
        $region36: #{tpu_custom_call.1} parent=31 // pred_fallthru
          _
        %s261 = sand.u32 %s28, 1
        %s262 = scalar_lea.sflag [#allocation6], %s261
        %s263 = sand.u32 %s76, 1
        %s264 = smul.addr %s263, 8
        %s265 = scalar_lea.vmem [#allocation5], %s264
        // Predicated region
        $region37: #{tpu_custom_call.1} parent=31 // pred_check
          %p266 = pneg %p89
        $region38: #{tpu_custom_call.1} parent=31 // pred_check_branch
          %268 = sbr.rel (%p266) target = $region40
        $region39: #{tpu_custom_call.1} parent=31 // pred_region
          %269 = dma.done %s262, 128
        $region40: #{tpu_custom_call.1} parent=31 // pred_fallthru
          _
        %s270 = sand.u32 %s28, 1
        %s271 = scalar_lea.sflag [#allocation6], %s270
        %s272 = sand.u32 %s102, 1
        %s273 = smul.addr %s272, 8
        %s274 = scalar_lea.vmem [#allocation7], %s273
        // Predicated region
        $region41: #{tpu_custom_call.1} parent=31 // pred_check
          %p275 = pneg %p115
        $region42: #{tpu_custom_call.1} parent=31 // pred_check_branch
          %277 = sbr.rel (%p275) target = $region44
        $region43: #{tpu_custom_call.1} parent=31 // pred_region
          %278 = dma.done %s271, 128
        $region44: #{tpu_custom_call.1} parent=31 // pred_fallthru
          _
        %s279 = sand.u32 %s50, 1
        %s280 = scalar_lea.sflag [#allocation3], %s279
        %s281 = sand.u32 %s50, 1
        %s282 = smul.addr %s281, 8
        %s283 = scalar_lea.vmem [#allocation2], %s282
        %p284 = pneg %p63
        %p285 = pneg %p60
        %s286 = sand.u32 %s28, 1
        %s287 = scalar_lea.sflag [#allocation6], %s286
        %s288 = sand.u32 %s76, 1
        %s289 = smul.addr %s288, 8
        %s290 = scalar_lea.vmem [#allocation5], %s289
        %p291 = pneg %p89
        %p292 = pneg %p86
        %s293 = sand.u32 %s28, 1
        %s294 = scalar_lea.sflag [#allocation6], %s293
        %s295 = sand.u32 %s102, 1
        %s296 = smul.addr %s295, 8
        %s297 = scalar_lea.vmem [#allocation7], %s296
        %p298 = pneg %p115
        %p299 = pneg %p112
        %p300 = pneg %p143
        %p301 = pneg %p140
        %s302 = sand.u32 %s130, 1
        %s303 = scalar_lea.sflag [#allocation4], %s302
        %s304 = sand.u32 %s130, 1
        %s305 = smul.addr %s304, 8
        %s306 = scalar_lea.vmem [#allocation8], %s305
        %p307 = pneg %p171
        %p308 = pneg %p168
        %s309 = sand.u32 %s158, 1
        %s310 = scalar_lea.sflag [#allocation10], %s309
        %s311 = sand.u32 %s158, 1
        %s312 = smul.addr %s311, 8
        %s313 = scalar_lea.vmem [#allocation9], %s312
        %v314 = vld [vmem:[%s256] sm:$0xff]
        %v315 = vmul.f32 %v314, 0.17677669
        %v316 = vld [vmem:[%s265] sm:$0xff]
        %v317 = vld [vmem:[%s274] sm:$0xff]
        %vm318 = vcmask 261120
        %v320 = vsel %vm318, %v315, 0
        %v323 = vsel %vm318, %v316, 0
        %325 = vmatprep.subr.mxu0 0.0
        %v326 = vand.u32 %v323, 4294901760
        %327 = vmatpush1.xpose.msra.mxu0 %v326
        %328 = vmatprep.subr.mxu0 0.0
        %329 = vmatpush1.xpose.msra.mxu0 0.0
        %330 = vmatprep.subr.mxu0 0.0
        %331 = vmatpush1.xpose.msra.mxu0 0.0
        %332 = vmatprep.subr.mxu0 0.0
        %333 = vmatpush1.xpose.msra.mxu0 0.0
        %334 = vmatprep.subr.mxu0 0.0
        %335 = vmatpush1.xpose.msra.mxu0 0.0
        %336 = vmatprep.subr.mxu0 0.0
        %337 = vmatpush1.xpose.msra.mxu0 0.0
        %338 = vmatprep.subr.mxu0 0.0
        %339 = vmatpush1.xpose.msra.mxu0 0.0
        %340 = vmatprep.subr.mxu0 0.0
        %341 = vmatpush1.xpose.msra.mxu0 0.0
        %342 = vmatprep.subr.mxu0 0.0
        %343 = vmatpush1.xpose.msra.mxu0 0.0
        %344 = vmatprep.subr.mxu0 0.0
        %345 = vmatpush1.xpose.msra.mxu0 0.0
        %346 = vmatprep.subr.mxu0 0.0
        %347 = vmatpush1.xpose.msra.mxu0 0.0
        %348 = vmatprep.subr.mxu0 0.0
        %349 = vmatpush1.xpose.msra.mxu0 0.0
        %350 = vmatprep.subr.mxu0 0.0
        %351 = vmatpush1.xpose.msra.mxu0 0.0
        %352 = vmatprep.subr.mxu0 0.0
        %353 = vmatpush1.xpose.msra.mxu0 0.0
        %354 = vmatprep.subr.mxu0 0.0
        %355 = vmatpush1.xpose.msra.mxu0 0.0
        %356 = vmatprep.subr.mxu0 0.0
        %357 = vmatpush1.xpose.msra.mxu0 0.0
        %358 = vmatprep.subr.mxu0 0.0
        %359 = vmatpush1.xpose.msra.mxu0 0.0
        %360 = vmatprep.subr.mxu0 0.0
        %361 = vmatpush1.xpose.msra.mxu0 0.0
        %362 = vmatprep.subr.mxu0 0.0
        %363 = vmatpush1.xpose.msra.mxu0 0.0
        %364 = vmatprep.subr.mxu0 0.0
        %365 = vmatpush1.xpose.msra.mxu0 0.0
        %366 = vmatprep.subr.mxu0 0.0
        %367 = vmatpush1.xpose.msra.mxu0 0.0
        %368 = vmatprep.subr.mxu0 0.0
        %369 = vmatpush1.xpose.msra.mxu0 0.0
        %370 = vmatprep.subr.mxu0 0.0
        %371 = vmatpush1.xpose.msra.mxu0 0.0
        %372 = vmatprep.subr.mxu0 0.0
        %373 = vmatpush1.xpose.msra.mxu0 0.0
        %374 = vmatprep.subr.mxu0 0.0
        %375 = vmatpush1.xpose.msra.mxu0 0.0
        %376 = vmatprep.subr.mxu0 0.0
        %377 = vmatpush1.xpose.msra.mxu0 0.0
        %378 = vmatprep.subr.mxu0 0.0
        %379 = vmatpush1.xpose.msra.mxu0 0.0
        %380 = vmatprep.subr.mxu0 0.0
        %381 = vmatpush1.xpose.msra.mxu0 0.0
        %382 = vmatprep.subr.mxu0 0.0
        %383 = vmatpush1.xpose.msra.mxu0 0.0
        %384 = vmatprep.subr.mxu0 0.0
        %385 = vmatpush1.xpose.msra.mxu0 0.0
        %386 = vmatprep.subr.mxu0 0.0
        %387 = vmatpush1.xpose.msra.mxu0 0.0
        %388 = vmatprep.subr.mxu0 0.0
        %389 = vmatpush1.xpose.msra.mxu0 0.0
        %390 = vmatprep.mubr.f32.mxu0 0.0
        %v391 = vand.u32 %v320, 4294901760
        %v392 = vsub.f32 %v320, %v391
        %v393 = vand.u32 %v392, 4294901760
        %v394 = vsub.f32 %v392, %v393
        %v395 = vand.u32 %v394, 4294901760
        %396 = vmatmul.mubr.f32.gmra.mrb[0].mxu0 %v395
        %v397 = vpop.f32.mrb[0].mxu0
        %v398 = vadd.f32 0.0, %v397
        %v399 = vpop.f32.mrb[0].mxu0
        %400 = vdwg.mxu0
        %401 = vmatprep.subr.mxu0 0.0
        %v402 = vand.u32 %v323, 4294901760
        %v403 = vsub.f32 %v323, %v402
        %v404 = vand.u32 %v403, 4294901760
        %v405 = vsub.f32 %v403, %v404
        %v406 = vand.u32 %v405, 4294901760
        %407 = vmatpush1.xpose.msra.mxu0 %v406
        %408 = vmatprep.subr.mxu0 0.0
        %409 = vmatpush1.xpose.msra.mxu0 0.0
        %410 = vmatprep.subr.mxu0 0.0
        %411 = vmatpush1.xpose.msra.mxu0 0.0
        %412 = vmatprep.subr.mxu0 0.0
        %413 = vmatpush1.xpose.msra.mxu0 0.0
        %414 = vmatprep.subr.mxu0 0.0
        %415 = vmatpush1.xpose.msra.mxu0 0.0
        %416 = vmatprep.subr.mxu0 0.0
        %417 = vmatpush1.xpose.msra.mxu0 0.0
        %418 = vmatprep.subr.mxu0 0.0
        %419 = vmatpush1.xpose.msra.mxu0 0.0
        %420 = vmatprep.subr.mxu0 0.0
        %421 = vmatpush1.xpose.msra.mxu0 0.0
        %422 = vmatprep.subr.mxu0 0.0
        %423 = vmatpush1.xpose.msra.mxu0 0.0
        %424 = vmatprep.subr.mxu0 0.0
        %425 = vmatpush1.xpose.msra.mxu0 0.0
        %426 = vmatprep.subr.mxu0 0.0
        %427 = vmatpush1.xpose.msra.mxu0 0.0
        %428 = vmatprep.subr.mxu0 0.0
        %429 = vmatpush1.xpose.msra.mxu0 0.0
        %430 = vmatprep.subr.mxu0 0.0
        %431 = vmatpush1.xpose.msra.mxu0 0.0
        %432 = vmatprep.subr.mxu0 0.0
        %433 = vmatpush1.xpose.msra.mxu0 0.0
        %434 = vmatprep.subr.mxu0 0.0
        %435 = vmatpush1.xpose.msra.mxu0 0.0
        %436 = vmatprep.subr.mxu0 0.0
        %437 = vmatpush1.xpose.msra.mxu0 0.0
        %438 = vmatprep.subr.mxu0 0.0
        %439 = vmatpush1.xpose.msra.mxu0 0.0
        %440 = vmatprep.subr.mxu0 0.0
        %441 = vmatpush1.xpose.msra.mxu0 0.0
        %442 = vmatprep.subr.mxu0 0.0
        %443 = vmatpush1.xpose.msra.mxu0 0.0
        %444 = vmatprep.subr.mxu0 0.0
        %445 = vmatpush1.xpose.msra.mxu0 0.0
        %446 = vmatprep.subr.mxu0 0.0
        %447 = vmatpush1.xpose.msra.mxu0 0.0
        %448 = vmatprep.subr.mxu0 0.0
        %449 = vmatpush1.xpose.msra.mxu0 0.0
        %450 = vmatprep.subr.mxu0 0.0
        %451 = vmatpush1.xpose.msra.mxu0 0.0
        %452 = vmatprep.subr.mxu0 0.0
        %453 = vmatpush1.xpose.msra.mxu0 0.0
        %454 = vmatprep.subr.mxu0 0.0
        %455 = vmatpush1.xpose.msra.mxu0 0.0
        %456 = vmatprep.subr.mxu0 0.0
        %457 = vmatpush1.xpose.msra.mxu0 0.0
        %458 = vmatprep.subr.mxu0 0.0
        %459 = vmatpush1.xpose.msra.mxu0 0.0
        %460 = vmatprep.subr.mxu0 0.0
        %461 = vmatpush1.xpose.msra.mxu0 0.0
        %462 = vmatprep.subr.mxu0 0.0
        %463 = vmatpush1.xpose.msra.mxu0 0.0
        %464 = vmatprep.subr.mxu0 0.0
        %465 = vmatpush1.xpose.msra.mxu0 0.0
        %466 = vmatprep.subr.mxu0 0.0
        %467 = vmatpush1.xpose.msra.mxu0 0.0
        %468 = vmatprep.subr.mxu0 0.0
        %469 = vmatpush1.xpose.msra.mxu0 0.0
        %470 = vmatprep.mubr.f32.mxu0 0.0
        %v471 = vand.u32 %v320, 4294901760
        %472 = vmatmul.mubr.f32.gmra.mrb[0].mxu0 %v471
        %v473 = vpop.f32.mrb[0].mxu0
        %v474 = vadd.f32 %v398, %v473
        %v475 = vpop.f32.mrb[0].mxu0
        %476 = vdwg.mxu0
        %477 = vmatprep.subr.mxu0 0.0
        %v478 = vand.u32 %v323, 4294901760
        %v479 = vsub.f32 %v323, %v478
        %480 = vmatpush1.xpose.msra.mxu0 %v479
        %481 = vmatprep.subr.mxu0 0.0
        %482 = vmatpush1.xpose.msra.mxu0 0.0
        %483 = vmatprep.subr.mxu0 0.0
        %484 = vmatpush1.xpose.msra.mxu0 0.0
        %485 = vmatprep.subr.mxu0 0.0
        %486 = vmatpush1.xpose.msra.mxu0 0.0
        %487 = vmatprep.subr.mxu0 0.0
        %488 = vmatpush1.xpose.msra.mxu0 0.0
        %489 = vmatprep.subr.mxu0 0.0
        %490 = vmatpush1.xpose.msra.mxu0 0.0
        %491 = vmatprep.subr.mxu0 0.0
        %492 = vmatpush1.xpose.msra.mxu0 0.0
        %493 = vmatprep.subr.mxu0 0.0
        %494 = vmatpush1.xpose.msra.mxu0 0.0
        %495 = vmatprep.subr.mxu0 0.0
        %496 = vmatpush1.xpose.msra.mxu0 0.0
        %497 = vmatprep.subr.mxu0 0.0
        %498 = vmatpush1.xpose.msra.mxu0 0.0
        %499 = vmatprep.subr.mxu0 0.0
        %500 = vmatpush1.xpose.msra.mxu0 0.0
        %501 = vmatprep.subr.mxu0 0.0
        %502 = vmatpush1.xpose.msra.mxu0 0.0
        %503 = vmatprep.subr.mxu0 0.0
        %504 = vmatpush1.xpose.msra.mxu0 0.0
        %505 = vmatprep.subr.mxu0 0.0
        %506 = vmatpush1.xpose.msra.mxu0 0.0
        %507 = vmatprep.subr.mxu0 0.0
        %508 = vmatpush1.xpose.msra.mxu0 0.0
        %509 = vmatprep.subr.mxu0 0.0
        %510 = vmatpush1.xpose.msra.mxu0 0.0
        %511 = vmatprep.subr.mxu0 0.0
        %512 = vmatpush1.xpose.msra.mxu0 0.0
        %513 = vmatprep.subr.mxu0 0.0
        %514 = vmatpush1.xpose.msra.mxu0 0.0
        %515 = vmatprep.subr.mxu0 0.0
        %516 = vmatpush1.xpose.msra.mxu0 0.0
        %517 = vmatprep.subr.mxu0 0.0
        %518 = vmatpush1.xpose.msra.mxu0 0.0
        %519 = vmatprep.subr.mxu0 0.0
        %520 = vmatpush1.xpose.msra.mxu0 0.0
        %521 = vmatprep.subr.mxu0 0.0
        %522 = vmatpush1.xpose.msra.mxu0 0.0
        %523 = vmatprep.subr.mxu0 0.0
        %524 = vmatpush1.xpose.msra.mxu0 0.0
        %525 = vmatprep.subr.mxu0 0.0
        %526 = vmatpush1.xpose.msra.mxu0 0.0
        %527 = vmatprep.subr.mxu0 0.0
        %528 = vmatpush1.xpose.msra.mxu0 0.0
        %529 = vmatprep.subr.mxu0 0.0
        %530 = vmatpush1.xpose.msra.mxu0 0.0
        %531 = vmatprep.subr.mxu0 0.0
        %532 = vmatpush1.xpose.msra.mxu0 0.0
        %533 = vmatprep.subr.mxu0 0.0
        %534 = vmatpush1.xpose.msra.mxu0 0.0
        %535 = vmatprep.subr.mxu0 0.0
        %536 = vmatpush1.xpose.msra.mxu0 0.0
        %537 = vmatprep.subr.mxu0 0.0
        %538 = vmatpush1.xpose.msra.mxu0 0.0
        %539 = vmatprep.subr.mxu0 0.0
        %540 = vmatpush1.xpose.msra.mxu0 0.0
        %541 = vmatprep.subr.mxu0 0.0
        %542 = vmatpush1.xpose.msra.mxu0 0.0
        %543 = vmatprep.mubr.f32.mxu0 0.0
        %v544 = vand.u32 %v320, 4294901760
        %v545 = vsub.f32 %v320, %v544
        %546 = vmatmul.mubr.f32.gmra.mrb[0].mxu0 %v545
        %v547 = vpop.f32.mrb[0].mxu0
        %v548 = vadd.f32 %v474, %v547
        %v549 = vpop.f32.mrb[0].mxu0
        %550 = vdwg.mxu0
        %551 = vmatprep.subr.mxu0 0.0
        %v552 = vand.u32 %v323, 4294901760
        %553 = vmatpush1.xpose.msra.mxu0 %v552
        %554 = vmatprep.subr.mxu0 0.0
        %555 = vmatpush1.xpose.msra.mxu0 0.0
        %556 = vmatprep.subr.mxu0 0.0
        %557 = vmatpush1.xpose.msra.mxu0 0.0
        %558 = vmatprep.subr.mxu0 0.0
        %559 = vmatpush1.xpose.msra.mxu0 0.0
        %560 = vmatprep.subr.mxu0 0.0
        %561 = vmatpush1.xpose.msra.mxu0 0.0
        %562 = vmatprep.subr.mxu0 0.0
        %563 = vmatpush1.xpose.msra.mxu0 0.0
        %564 = vmatprep.subr.mxu0 0.0
        %565 = vmatpush1.xpose.msra.mxu0 0.0
        %566 = vmatprep.subr.mxu0 0.0
        %567 = vmatpush1.xpose.msra.mxu0 0.0
        %568 = vmatprep.subr.mxu0 0.0
        %569 = vmatpush1.xpose.msra.mxu0 0.0
        %570 = vmatprep.subr.mxu0 0.0
        %571 = vmatpush1.xpose.msra.mxu0 0.0
        %572 = vmatprep.subr.mxu0 0.0
        %573 = vmatpush1.xpose.msra.mxu0 0.0
        %574 = vmatprep.subr.mxu0 0.0
        %575 = vmatpush1.xpose.msra.mxu0 0.0
        %576 = vmatprep.subr.mxu0 0.0
        %577 = vmatpush1.xpose.msra.mxu0 0.0
        %578 = vmatprep.subr.mxu0 0.0
        %579 = vmatpush1.xpose.msra.mxu0 0.0
        %580 = vmatprep.subr.mxu0 0.0
        %581 = vmatpush1.xpose.msra.mxu0 0.0
        %582 = vmatprep.subr.mxu0 0.0
        %583 = vmatpush1.xpose.msra.mxu0 0.0
        %584 = vmatprep.subr.mxu0 0.0
        %585 = vmatpush1.xpose.msra.mxu0 0.0
        %586 = vmatprep.subr.mxu0 0.0
        %587 = vmatpush1.xpose.msra.mxu0 0.0
        %588 = vmatprep.subr.mxu0 0.0
        %589 = vmatpush1.xpose.msra.mxu0 0.0
        %590 = vmatprep.subr.mxu0 0.0
        %591 = vmatpush1.xpose.msra.mxu0 0.0
        %592 = vmatprep.subr.mxu0 0.0
        %593 = vmatpush1.xpose.msra.mxu0 0.0
        %594 = vmatprep.subr.mxu0 0.0
        %595 = vmatpush1.xpose.msra.mxu0 0.0
        %596 = vmatprep.subr.mxu0 0.0
        %597 = vmatpush1.xpose.msra.mxu0 0.0
        %598 = vmatprep.subr.mxu0 0.0
        %599 = vmatpush1.xpose.msra.mxu0 0.0
        %600 = vmatprep.subr.mxu0 0.0
        %601 = vmatpush1.xpose.msra.mxu0 0.0
        %602 = vmatprep.subr.mxu0 0.0
        %603 = vmatpush1.xpose.msra.mxu0 0.0
        %604 = vmatprep.subr.mxu0 0.0
        %605 = vmatpush1.xpose.msra.mxu0 0.0
        %606 = vmatprep.subr.mxu0 0.0
        %607 = vmatpush1.xpose.msra.mxu0 0.0
        %608 = vmatprep.subr.mxu0 0.0
        %609 = vmatpush1.xpose.msra.mxu0 0.0
        %610 = vmatprep.subr.mxu0 0.0
        %611 = vmatpush1.xpose.msra.mxu0 0.0
        %612 = vmatprep.subr.mxu0 0.0
        %613 = vmatpush1.xpose.msra.mxu0 0.0
        %614 = vmatprep.subr.mxu0 0.0
        %615 = vmatpush1.xpose.msra.mxu0 0.0
        %616 = vmatprep.mubr.f32.mxu0 0.0
        %v617 = vand.u32 %v320, 4294901760
        %v618 = vsub.f32 %v320, %v617
        %v619 = vand.u32 %v618, 4294901760
        %620 = vmatmul.mubr.f32.gmra.mrb[0].mxu0 %v619
        %v621 = vpop.f32.mrb[0].mxu0
        %v622 = vadd.f32 %v548, %v621
        %v623 = vpop.f32.mrb[0].mxu0
        %624 = vdwg.mxu0
        %625 = vmatprep.subr.mxu0 0.0
        %v626 = vand.u32 %v323, 4294901760
        %v627 = vsub.f32 %v323, %v626
        %v628 = vand.u32 %v627, 4294901760
        %629 = vmatpush1.xpose.msra.mxu0 %v628
        %630 = vmatprep.subr.mxu0 0.0
        %631 = vmatpush1.xpose.msra.mxu0 0.0
        %632 = vmatprep.subr.mxu0 0.0
        %633 = vmatpush1.xpose.msra.mxu0 0.0
        %634 = vmatprep.subr.mxu0 0.0
        %635 = vmatpush1.xpose.msra.mxu0 0.0
        %636 = vmatprep.subr.mxu0 0.0
        %637 = vmatpush1.xpose.msra.mxu0 0.0
        %638 = vmatprep.subr.mxu0 0.0
        %639 = vmatpush1.xpose.msra.mxu0 0.0
        %640 = vmatprep.subr.mxu0 0.0
        %641 = vmatpush1.xpose.msra.mxu0 0.0
        %642 = vmatprep.subr.mxu0 0.0
        %643 = vmatpush1.xpose.msra.mxu0 0.0
        %644 = vmatprep.subr.mxu0 0.0
        %645 = vmatpush1.xpose.msra.mxu0 0.0
        %646 = vmatprep.subr.mxu0 0.0
        %647 = vmatpush1.xpose.msra.mxu0 0.0
        %648 = vmatprep.subr.mxu0 0.0
        %649 = vmatpush1.xpose.msra.mxu0 0.0
        %650 = vmatprep.subr.mxu0 0.0
        %651 = vmatpush1.xpose.msra.mxu0 0.0
        %652 = vmatprep.subr.mxu0 0.0
        %653 = vmatpush1.xpose.msra.mxu0 0.0
        %654 = vmatprep.subr.mxu0 0.0
        %655 = vmatpush1.xpose.msra.mxu0 0.0
        %656 = vmatprep.subr.mxu0 0.0
        %657 = vmatpush1.xpose.msra.mxu0 0.0
        %658 = vmatprep.subr.mxu0 0.0
        %659 = vmatpush1.xpose.msra.mxu0 0.0
        %660 = vmatprep.subr.mxu0 0.0
        %661 = vmatpush1.xpose.msra.mxu0 0.0
        %662 = vmatprep.subr.mxu0 0.0
        %663 = vmatpush1.xpose.msra.mxu0 0.0
        %664 = vmatprep.subr.mxu0 0.0
        %665 = vmatpush1.xpose.msra.mxu0 0.0
        %666 = vmatprep.subr.mxu0 0.0
        %667 = vmatpush1.xpose.msra.mxu0 0.0
        %668 = vmatprep.subr.mxu0 0.0
        %669 = vmatpush1.xpose.msra.mxu0 0.0
        %670 = vmatprep.subr.mxu0 0.0
        %671 = vmatpush1.xpose.msra.mxu0 0.0
        %672 = vmatprep.subr.mxu0 0.0
        %673 = vmatpush1.xpose.msra.mxu0 0.0
        %674 = vmatprep.subr.mxu0 0.0
        %675 = vmatpush1.xpose.msra.mxu0 0.0
        %676 = vmatprep.subr.mxu0 0.0
        %677 = vmatpush1.xpose.msra.mxu0 0.0
        %678 = vmatprep.subr.mxu0 0.0
        %679 = vmatpush1.xpose.msra.mxu0 0.0
        %680 = vmatprep.subr.mxu0 0.0
        %681 = vmatpush1.xpose.msra.mxu0 0.0
        %682 = vmatprep.subr.mxu0 0.0
        %683 = vmatpush1.xpose.msra.mxu0 0.0
        %684 = vmatprep.subr.mxu0 0.0
        %685 = vmatpush1.xpose.msra.mxu0 0.0
        %686 = vmatprep.subr.mxu0 0.0
        %687 = vmatpush1.xpose.msra.mxu0 0.0
        %688 = vmatprep.subr.mxu0 0.0
        %689 = vmatpush1.xpose.msra.mxu0 0.0
        %690 = vmatprep.subr.mxu0 0.0
        %691 = vmatpush1.xpose.msra.mxu0 0.0
        %692 = vmatprep.mubr.f32.mxu0 0.0
        %v693 = vand.u32 %v320, 4294901760
        %694 = vmatmul.mubr.f32.gmra.mrb[0].mxu0 %v693
        %v695 = vpop.f32.mrb[0].mxu0
        %v696 = vadd.f32 %v622, %v695
        %v697 = vpop.f32.mrb[0].mxu0
        %698 = vdwg.mxu0
        %699 = vmatprep.subr.mxu0 0.0
        %v700 = vand.u32 %v323, 4294901760
        %701 = vmatpush1.xpose.msra.mxu0 %v700
        %702 = vmatprep.subr.mxu0 0.0
        %703 = vmatpush1.xpose.msra.mxu0 0.0
        %704 = vmatprep.subr.mxu0 0.0
        %705 = vmatpush1.xpose.msra.mxu0 0.0
        %706 = vmatprep.subr.mxu0 0.0
        %707 = vmatpush1.xpose.msra.mxu0 0.0
        %708 = vmatprep.subr.mxu0 0.0
        %709 = vmatpush1.xpose.msra.mxu0 0.0
        %710 = vmatprep.subr.mxu0 0.0
        %711 = vmatpush1.xpose.msra.mxu0 0.0
        %712 = vmatprep.subr.mxu0 0.0
        %713 = vmatpush1.xpose.msra.mxu0 0.0
        %714 = vmatprep.subr.mxu0 0.0
        %715 = vmatpush1.xpose.msra.mxu0 0.0
        %716 = vmatprep.subr.mxu0 0.0
        %717 = vmatpush1.xpose.msra.mxu0 0.0
        %718 = vmatprep.subr.mxu0 0.0
        %719 = vmatpush1.xpose.msra.mxu0 0.0
        %720 = vmatprep.subr.mxu0 0.0
        %721 = vmatpush1.xpose.msra.mxu0 0.0
        %722 = vmatprep.subr.mxu0 0.0
        %723 = vmatpush1.xpose.msra.mxu0 0.0
        %724 = vmatprep.subr.mxu0 0.0
        %725 = vmatpush1.xpose.msra.mxu0 0.0
        %726 = vmatprep.subr.mxu0 0.0
        %727 = vmatpush1.xpose.msra.mxu0 0.0
        %728 = vmatprep.subr.mxu0 0.0
        %729 = vmatpush1.xpose.msra.mxu0 0.0
        %730 = vmatprep.subr.mxu0 0.0
        %731 = vmatpush1.xpose.msra.mxu0 0.0
        %732 = vmatprep.subr.mxu0 0.0
        %733 = vmatpush1.xpose.msra.mxu0 0.0
        %734 = vmatprep.subr.mxu0 0.0
        %735 = vmatpush1.xpose.msra.mxu0 0.0
        %736 = vmatprep.subr.mxu0 0.0
        %737 = vmatpush1.xpose.msra.mxu0 0.0
        %738 = vmatprep.subr.mxu0 0.0
        %739 = vmatpush1.xpose.msra.mxu0 0.0
        %740 = vmatprep.subr.mxu0 0.0
        %741 = vmatpush1.xpose.msra.mxu0 0.0
        %742 = vmatprep.subr.mxu0 0.0
        %743 = vmatpush1.xpose.msra.mxu0 0.0
        %744 = vmatprep.subr.mxu0 0.0
        %745 = vmatpush1.xpose.msra.mxu0 0.0
        %746 = vmatprep.subr.mxu0 0.0
        %747 = vmatpush1.xpose.msra.mxu0 0.0
        %748 = vmatprep.subr.mxu0 0.0
        %749 = vmatpush1.xpose.msra.mxu0 0.0
        %750 = vmatprep.subr.mxu0 0.0
        %751 = vmatpush1.xpose.msra.mxu0 0.0
        %752 = vmatprep.subr.mxu0 0.0
        %753 = vmatpush1.xpose.msra.mxu0 0.0
        %754 = vmatprep.subr.mxu0 0.0
        %755 = vmatpush1.xpose.msra.mxu0 0.0
        %756 = vmatprep.subr.mxu0 0.0
        %757 = vmatpush1.xpose.msra.mxu0 0.0
        %758 = vmatprep.subr.mxu0 0.0
        %759 = vmatpush1.xpose.msra.mxu0 0.0
        %760 = vmatprep.subr.mxu0 0.0
        %761 = vmatpush1.xpose.msra.mxu0 0.0
        %762 = vmatprep.subr.mxu0 0.0
        %763 = vmatpush1.xpose.msra.mxu0 0.0
        %764 = vmatprep.mubr.f32.mxu0 0.0
        %v765 = vand.u32 %v320, 4294901760
        %766 = vmatmul.mubr.f32.gmra.mrb[0].mxu0 %v765
        %v767 = vpop.f32.mrb[0].mxu0
        %v768 = vadd.f32 %v696, %v767
        %v769 = vpop.f32.mrb[0].mxu0
        %770 = vdwg.mxu0
        %vm771 = vcmask 64512
        %v772 = vsel %vm771, %v768, -inf
        %773 = vmax.xlane.f32.xlu0 %v772
        %v774 = vpop.xlane.xlu0 %773
        %v775 = vsub.f32 %v768, %v774
        %v776 = vmul.f32 %v775, 1.442695
        %v777 = vpow.pop %v776
        %v778 = vsel %vm771, %v777, 0.0
        %779 = vadd.xlane.f32.xlu0 %v778
        %v780 = vpop.xlane.xlu0 %779
        %v781 = vrcp.pop %v780
        %v782 = vmul.f32 %v777, %v781
        %783 = vst.msk [vmem:[%s313] sm:$0xff] %vm771, %v782
        %v784 = vsel %vm771, %v782, 0.0
        %785 = vadd.xlane.f32.xlu0 %v784
        %v786 = vpop.xlane.xlu0 %785
        %v787 = vsel %vm318, %v317, 0.0
        %v788 = vrot.slane %v787, 4
        %v789 = vadd.f32 %v787, %v788
        %v790 = vrot.slane %v789, 2
        %v791 = vadd.f32 %v789, %v790
        %v792 = vrot.slane %v791, 1
        %v793 = vadd.f32 %v791, %v792
        %v794 = vmul.f32 %v786, %v793
        %795 = vst.msk [vmem:[%s306] sm:$0xff] %vm318, %v794
        %s796 = sand.u32 %s130, 1
        %s797 = scalar_lea.sflag [#allocation4], %s796
        %s798 = sand.u32 %s130, 1
        %s799 = smul.addr %s798, 8
        %s800 = scalar_lea.vmem [#allocation8], %s799
        %s801 = sand.u32 %s158, 1
        %s802 = scalar_lea.sflag [#allocation10], %s801
        %s803 = sand.u32 %s158, 1
        %s804 = smul.addr %s803, 8
        %s805 = scalar_lea.vmem [#allocation9], %s804
        // Predicated region
        $region45: #{tpu_custom_call.1} parent=31 // pred_check
          %p806 = pneg %p140
        $region46: #{tpu_custom_call.1} parent=31 // pred_check_branch
          %808 = sbr.rel (%p806) target = $region48
        $region47: #{tpu_custom_call.1} parent=31 // pred_region
          %s810 = ssub.s32 128, 128
          %811 = vsyncadd %s797, %s810
          %s812 = sadd.s32 %s33, %s32
          %s813 = smul.addr %s812, 128
          %s814 = scalar_lea.hbm %s3, %s813
          %s816 = sshll.u32 %s800, 4
          %s817 = int_to_ptr.vmem [resolvable:$true] %s816
          %819 = dma.vmem_to_hbm [thread:$0]  %s817, 128, %s814, %s797
        $region48: #{tpu_custom_call.1} parent=31 // pred_fallthru
          _
        // Predicated region
        $region49: #{tpu_custom_call.1} parent=31 // pred_check
          %p820 = pneg %p168
        $region50: #{tpu_custom_call.1} parent=31 // pred_check_branch
          %822 = sbr.rel (%p820) target = $region52
        $region51: #{tpu_custom_call.1} parent=31 // pred_region
          %s824 = ssub.s32 128, 128
          %825 = vsyncadd %s802, %s824
          %s826 = sadd.s32 %s33, %s32
          %s827 = smul.addr %s826, 128
          %s828 = scalar_lea.hbm %s4, %s827
          %s830 = sshll.u32 %s805, 4
          %s831 = int_to_ptr.vmem [resolvable:$true] %s830
          %833 = dma.vmem_to_hbm [thread:$0]  %s831, 128, %s828, %s802
        $region52: #{tpu_custom_call.1} parent=31 // pred_fallthru
          _
      $region32: #{tpu_custom_call.1} parent=5 // pred_fallthru
        _
      %p834 = scmp.le.s32.totalorder 2, %s23
      // Predicated region
      $region53: #{tpu_custom_call.1} parent=5 // pred_check
        %p835 = pneg %p834
      $region54: #{tpu_custom_call.1} parent=5 // pred_check_branch
        %837 = sbr.rel (%p835) target = $region56
      $region55: #{tpu_custom_call.1} parent=5 // pred_region
        %s838 = ssub.s32 %s23, 2
        // Predicated region
        $region57: #{tpu_custom_call.1} parent=55 // pred_check
          %p839 = pneg %p146
        $region58: #{tpu_custom_call.1} parent=55 // pred_check_branch
          %841 = sbr.rel (%p839) target = $region60
        $region59: #{tpu_custom_call.1} parent=55 // pred_region
          %s842 = sand.u32 %s131, 1
          %s843 = scalar_lea.sflag [#allocation4], %s842
          %s844 = sand.u32 %s131, 1
          %s845 = smul.addr %s844, 8
          %s846 = scalar_lea.vmem [#allocation8], %s845
          %847 = dma.done %s843, 128
        $region60: #{tpu_custom_call.1} parent=55 // pred_fallthru
          _
        // Predicated region
        $region61: #{tpu_custom_call.1} parent=55 // pred_check
          %p848 = pneg %p174
        $region62: #{tpu_custom_call.1} parent=55 // pred_check_branch
          %850 = sbr.rel (%p848) target = $region64
        $region63: #{tpu_custom_call.1} parent=55 // pred_region
          %s851 = sand.u32 %s159, 1
          %s852 = scalar_lea.sflag [#allocation10], %s851
          %s853 = sand.u32 %s159, 1
          %s854 = smul.addr %s853, 8
          %s855 = scalar_lea.vmem [#allocation9], %s854
          %856 = dma.done %s852, 128
        $region64: #{tpu_custom_call.1} parent=55 // pred_fallthru
          _
      $region56: #{tpu_custom_call.1} parent=5 // pred_fallthru
        _
    $region6: #{tpu_custom_call.1} parent=1 // loop_footer
      %s27 = sadd.s32 1, %s23
    $region7: #{tpu_custom_call.1} parent=1 // loop_footer_branch
      %22 = sbr.rel target = $region3
    $region8: #{tpu_custom_call.1} parent=1 // loop_exit
      _
    %857 = vsyncpa [#allocation3], 1
    %s858 = scalar_lea.sflag [#allocation3], 1
    %859 = vsyncpa %s858, 1
    %860 = vsyncpa [#allocation6], 1
    %s861 = scalar_lea.sflag [#allocation6], 1
    %862 = vsyncpa %s861, 1
    %863 = vsyncpa [#allocation4], 1
    %s864 = scalar_lea.sflag [#allocation4], 1
    %865 = vsyncpa %s864, 1
    %866 = vsyncpa [#allocation10], 1
    %s867 = scalar_lea.sflag [#allocation10], 1
    %868 = vsyncpa %s867, 1

</llo_original>
